<compile_context>
chip_gen: v7x
topology: tpu7x:2x2x1
jax: 0.10.0
libtpu: 0.0.40
codegen_flags: <defaults>
</compile_context>

<pallas_src>
import math
import numpy as np
import jax
import jax.numpy as jnp
from jax.experimental import pallas as pl
from jax.experimental.pallas import tpu as pltpu


def _round_up(x, m):
    return ((x + m - 1) // m) * m


# ---------------------------------------------------------------------------
# IsoSHConv.construct_filter, reproduced exactly (numpy glue)
# ---------------------------------------------------------------------------
def construct_filter(filt, full_basis, sh_degree):
    """filt: [in_channel, S, L] -> [1, in_channel, S, number] (float32)."""
    filt = np.asarray(filt, dtype=np.float32)
    L = filt.shape[2]
    scale = np.array([math.sqrt(4 * math.pi / (4 * l + 1)) for l in range(L)],
                     dtype=np.float32)[None, None, :]
    filt = scale * filt
    repeat = np.array([int(4 * l + 1) for l in range(L)], dtype=np.int64)
    filt = np.repeat(filt, repeat, axis=2)
    filt = filt[None, :, :, :]
    if full_basis:
        number = int((sh_degree + 1) * (sh_degree + 1))
        n_range = np.arange(0, sh_degree + 1, dtype=int)
    else:
        number = int((sh_degree + 1) * ((sh_degree + 2) / 2))
        n_range = np.arange(0, sh_degree + 1, 2, dtype=int)
    n_list = np.repeat(n_range, n_range * 2 + 1)
    even_indices = np.where(n_list % 2 == 0)[0].tolist()
    filter_full = np.zeros(
        (filt.shape[0], filt.shape[1], filt.shape[2], number), dtype=np.float32)
    filter_full[..., even_indices] = filt  # broadcasts, same as torch advanced indexing
    return filter_full  # [1, in_ch, S, number]


# ---------------------------------------------------------------------------
# Pallas kernel: fused (filter-mul -> SH-to-signal matmul -> channel-sum -> add)
# plus the elementwise equi convolved-SHC output, on one (voxel-tile, batch).
# ---------------------------------------------------------------------------
def recon_kernel(ae_ref, ai_ref, fe_ref, xe_ref, xi_ref, recon_ref, shc_ref):
    # ae_ref : [EC, V, C]      per-equi-channel projection (SH basis * polar filter)
    # ai_ref : [V, IC]         inva projection (SH basis @ polar filter, c-summed)
    # fe_ref : [EC, S, C, 1]   equi polar filter columns (for the SHC output)
    # xe_ref : [1, EC, C, TN]  equi SHC voxel tile
    # xi_ref : [1, IC, TN]     inva SHC voxel tile
    EC = xe_ref.shape[1]
    S = fe_ref.shape[1]

    # invariant-channel contribution (tiny K=IC matmul; MXU is free filler here)
    acc = jnp.dot(ai_ref[...], xi_ref[0], preferred_element_type=jnp.float32)

    for ec in range(EC):                      # static, EC is small
        x_ec = xe_ref[0, ec]                  # [C, TN], leading-axis indexed (no relayout)
        acc = acc + jnp.dot(ae_ref[ec], x_ec, preferred_element_type=jnp.float32)
        for s in range(S):                    # static, S is small
            # convolved equi SHC: per-row scalar (column) broadcast, fully 2D
            shc_ref[0, ec, s] = (x_ec * fe_ref[ec, s]).astype(shc_ref.dtype)

    recon_ref[0] = acc.astype(recon_ref.dtype)


# ---------------------------------------------------------------------------
# Generation-aware tiling helpers
# ---------------------------------------------------------------------------
def _vmem_budget_bytes():
    """VMEM budget: ~3/4 of physical per-core VMEM, capped at 96 MiB."""
    cap = None
    try:
        info = pltpu.get_tpu_info()
        for name in ("vmem_capacity_bytes", "vmem_size_bytes", "vmem_bytes"):
            cap = getattr(info, name, None)
            if cap:
                break
    except Exception:
        cap = None
    if not cap:
        cap = 64 * 1024 * 1024          # conservative (v7x per-TC physical)
    return int(min(cap * 3 // 4, 96 * 1024 * 1024))


def _choose_tile_n(N, tile_n, EC, IC, S, C, V, x_dtype, recon_dtype, shc_dtype,
                   budget_bytes):
    """Largest lane tile (multiple of 128) whose double-buffered footprint fits."""
    def _pad_rows(rows, dtype):
        itemsize = np.dtype(dtype).itemsize
        sub = 8 * max(1, 4 // itemsize)          # 8 sublanes for 4B, 16 for 2B
        return _round_up(max(int(rows), 1), sub)

    x_isz = np.dtype(x_dtype).itemsize
    r_isz = np.dtype(recon_dtype).itemsize
    s_isz = np.dtype(shc_dtype).itemsize
    # bytes per TN unit for the streamed, double-buffered blocks (+ f32 accumulator)
    per_tn = (2 * EC * _pad_rows(C, x_dtype) * x_isz            # xe block
              + 2 * _pad_rows(IC, x_dtype) * x_isz              # xi block
              + 2 * _pad_rows(V, recon_dtype) * r_isz           # recon block
              + 2 * EC * S * _pad_rows(C, shc_dtype) * s_isz    # shc block
              + _pad_rows(V, jnp.float32) * 4)                  # accumulator
    # resident (constant-index) projection matrices
    resident = (2 * EC * _pad_rows(V, jnp.float32) * _round_up(C, 128) * 4
                + 2 * _pad_rows(V, jnp.float32) * _round_up(IC, 128) * 4
                + 2 * EC * S * _pad_rows(C, jnp.float32) * 128 * 4)
    avail = max(budget_bytes - resident, 512 * 1024)

    TN = _round_up(min(int(tile_n), _round_up(N, 128)), 128)
    while TN > 128 and TN * per_tn > avail:
        TN = max(128, _round_up(TN // 2, 128))
    return TN


# ---------------------------------------------------------------------------
# Wrapper
# ---------------------------------------------------------------------------
def reconstruction_pallas(x_equi_shc, x_inva_shc, fe_full, fi_full, sh_basis,
                          *, tile_n=8192,
                          recon_dtype=jnp.bfloat16, shc_dtype=jnp.bfloat16):
    """x_equi_shc: [B, EC, C, X, Y, Z], x_inva_shc: [B, IC, 1, X, Y, Z]
       fe_full/fi_full: [1, ch, S, C], sh_basis: [S, Vs, C]
       returns (recon [B, V, X, Y, Z], conv_equi_shc [B, EC, S, C, X, Y, Z]).

       Accumulation is always f32; only the final stores use recon_dtype /
       shc_dtype (default bf16 to halve HBM write traffic). Pass jnp.float32
       for both to bit-match the PyTorch module."""
    B, EC, C, X, Y, Z = x_equi_shc.shape
    IC = x_inva_shc.shape[1]
    S, Vs, _ = sh_basis.shape
    V = S * Vs
    N = X * Y * Z

    # --- precompute fused projection matrices (tiny, plain JAX glue) --------
    fe0 = fe_full[0].astype(jnp.float32)       # [EC, S, C]
    fi0 = fi_full[0].astype(jnp.float32)       # [IC, S, C]
    yb = sh_basis.astype(jnp.float32)          # [S, Vs, C]
    # A_e[ec, (s,v), c] = Y[s,v,c] * f_equi[ec,s,c]  (channel sum done in-kernel)
    a_e = jnp.einsum('svc,esc->esvc', yb, fe0).reshape(EC, V, C)
    # A_i[(s,v), ic] = sum_c Y[s,v,c] * f_inva[ic,s,c]
    a_i = jnp.einsum('svc,isc->svi', yb, fi0).reshape(V, IC)
    fe_col = fe0[..., None]                    # [EC, S, C, 1]

    # --- voxel-flattened views (free reshapes; NO pad, NO dtype upcast) -----
    xe = x_equi_shc.reshape(B, EC, C, N)
    xi = x_inva_shc.reshape(B, IC, N)

    # --- generation-aware tile / VMEM budget ---------------------------------
    budget = _vmem_budget_bytes()
    TN = _choose_tile_n(N, tile_n, EC, IC, S, C, V, xe.dtype,
                        recon_dtype, shc_dtype, budget)

    # voxel-tile axis first so v7x's two TensorCores shard the big even axis
    grid = (pl.cdiv(N, TN), B)

    recon, shc = pl.pallas_call(
        recon_kernel,
        out_shape=(
            jax.ShapeDtypeStruct((B, V, N), recon_dtype),
            jax.ShapeDtypeStruct((B, EC, S, C, N), shc_dtype),
        ),
        grid_spec=pltpu.PrefetchScalarGridSpec(
            num_scalar_prefetch=0,
            grid=grid,
            in_specs=[
                # constant index maps -> matrices stay resident across the grid
                pl.BlockSpec((EC, V, C), lambda n, b: (0, 0, 0)),
                pl.BlockSpec((V, IC), lambda n, b: (0, 0)),
                pl.BlockSpec((EC, S, C, 1), lambda n, b: (0, 0, 0, 0)),
                # streamed voxel tiles (boundary blocks masked by Pallas)
                pl.BlockSpec((1, EC, C, TN), lambda n, b: (b, 0, 0, n)),
                pl.BlockSpec((1, IC, TN), lambda n, b: (b, 0, n)),
            ],
            out_specs=[
                pl.BlockSpec((1, V, TN), lambda n, b: (b, 0, n)),
                pl.BlockSpec((1, EC, S, C, TN), lambda n, b: (b, 0, 0, 0, n)),
            ],
        ),
        compiler_params=pltpu.CompilerParams(
            dimension_semantics=("parallel", "parallel"),
            vmem_limit_bytes=budget,
        ),
    )(a_e, a_i, fe_col, xe, xi)

    return (recon.reshape(B, V, X, Y, Z),
            shc.reshape(B, EC, S, C, X, Y, Z))


# ---------------------------------------------------------------------------
# Pure-JAX reference (mirrors the PyTorch forward exactly)
# ---------------------------------------------------------------------------
def reconstruction_ref(x_equi_shc, x_inva_shc, fe_full, fi_full, sh_basis):
    B, EC, C, X, Y, Z = x_equi_shc.shape
    IC = x_inva_shc.shape[1]
    S, Vs, _ = sh_basis.shape
    # IsoSHConv
    conv_e = x_equi_shc[:, :, None] * fe_full[:, :, :, :, None, None, None]
    conv_i = x_inva_shc[:, :, None] * fi_full[:, :, :, :, None, None, None]
    # ShellComputeSignal: per-shell SH basis projection, vertices concatenated
    sig_e = jnp.einsum('svc,bnscxyz->bnsvxyz', sh_basis, conv_e)
    sig_e = sig_e.reshape(B, EC, S * Vs, X, Y, Z).sum(axis=1)
    sig_i = jnp.einsum('svc,bnscxyz->bnsvxyz', sh_basis, conv_i)
    sig_i = sig_i.reshape(B, IC, S * Vs, X, Y, Z).sum(axis=1)
    return sig_e + sig_i, conv_e


if __name__ == "__main__":
    # small deterministic problem (N = 360 voxels -> exercises the masked
    # boundary block; a tile_n=256 run exercises the multi-tile voxel grid)
    B, EC, IC = 2, 2, 1
    S, sh_degree = 2, 4
    full_basis = False
    C = (sh_degree + 1) * (sh_degree + 2) // 2      # 15
    L = sh_degree // 2 + 1                          # 3 (even degrees 0,2,4)
    X, Y, Z = 6, 6, 10                              # N = 360
    Vs = 10                                         # directions per shell

    key = jax.random.PRNGKey(0)
    k1, k2, k3, k4, k5 = jax.random.split(key, 5)

    polar_filter_equi = jax.random.normal(k1, (EC, S, L), dtype=jnp.float32)
    polar_filter_inva = jax.random.normal(k2, (IC, S, 1), dtype=jnp.float32)
    fe_full = jnp.asarray(construct_filter(np.asarray(polar_filter_equi),
                                           full_basis, sh_degree))
    fi_full = jnp.asarray(construct_filter(np.asarray(polar_filter_inva),
                                           full_basis, sh_degree))

    sh_basis = jax.random.normal(k3, (S, Vs, C), dtype=jnp.float32)  # synthetic Y_s

    x_equi_shc = jax.random.normal(k4, (B, EC, C, X, Y, Z), dtype=jnp.float32)
    x_inva_shc = jax.random.normal(k5, (B, IC, 1, X, Y, Z), dtype=jnp.float32)

    recon_r, conv_r = reconstruction_ref(
        x_equi_shc, x_inva_shc, fe_full, fi_full, sh_basis)

    # 1) default path: bf16 outputs, large tile (single tile here)
    recon_bf, shc_bf = reconstruction_pallas(
        x_equi_shc, x_inva_shc, fe_full, fi_full, sh_basis)
    jax.block_until_ready(recon_bf)
    jax.block_until_ready(shc_bf)
    np.testing.assert_allclose(np.asarray(recon_bf.astype(jnp.float32)),
                               np.asarray(recon_r), rtol=1e-2, atol=1e-2)
    np.testing.assert_allclose(np.asarray(shc_bf.astype(jnp.float32)),
                               np.asarray(conv_r), rtol=1e-2, atol=1e-2)

    # 2) f32 outputs + small tile: exercises multi-tile grid with a masked
    #    boundary block (360 = 2 tiles of 256) and bit-matches the reference
    recon_f, shc_f = reconstruction_pallas(
        x_equi_shc, x_inva_shc, fe_full, fi_full, sh_basis,
        tile_n=256, recon_dtype=jnp.float32, shc_dtype=jnp.float32)
    jax.block_until_ready(recon_f)
    jax.block_until_ready(shc_f)
    np.testing.assert_allclose(np.asarray(recon_f), np.asarray(recon_r),
                               rtol=1e-4, atol=1e-4)
    np.testing.assert_allclose(np.asarray(shc_f), np.asarray(conv_r),
                               rtol=1e-4, atol=1e-4)

    print("KERNEL_OK")
</pallas_src>

<mosaic_0001>
module attributes {stable_mosaic.version = 11 : i64} {
  func.func @recon_kernel(%arg0: i32, %arg1: i32, %arg2: memref<2x20x15xf32, #tpu.memory_space<vmem>>, %arg3: memref<20x1xf32, #tpu.memory_space<vmem>>, %arg4: memref<2x2x15x1xf32, #tpu.memory_space<vmem>>, %arg5: memref<1x2x15x384xf32, #tpu.memory_space<vmem>>, %arg6: memref<1x1x384xf32, #tpu.memory_space<vmem>>, %arg7: memref<1x20x384xbf16, #tpu.memory_space<vmem>>, %arg8: memref<1x2x2x15x384xbf16, #tpu.memory_space<vmem>>) attributes {dimension_semantics = [#tpu.dimension_semantics<parallel>, #tpu.dimension_semantics<parallel>], iteration_bounds = array<i64: 1, 2>, scalar_prefetch = 0 : i64, scratch_operands = 0 : i64, tpu.core_type = #tpu.core_type<tc>, window_params = [{pipeline_mode = #tpu.pipeline_mode<synchronous>, transform_indices = @transform_0, window_bounds = array<i64: 2, 20, 15>}, {pipeline_mode = #tpu.pipeline_mode<synchronous>, transform_indices = @transform_1, window_bounds = array<i64: 20, 1>}, {pipeline_mode = #tpu.pipeline_mode<synchronous>, transform_indices = @transform_2, window_bounds = array<i64: 2, 2, 15, 1>}, {transform_indices = @transform_3, window_bounds = array<i64: 1, 2, 15, 384>}, {transform_indices = @transform_4, window_bounds = array<i64: 1, 1, 384>}, {transform_indices = @transform_5, window_bounds = array<i64: 1, 20, 384>}, {transform_indices = @transform_6, window_bounds = array<i64: 1, 2, 2, 15, 384>}]} {
    %c0 = arith.constant 0 : index
    %c0_0 = arith.constant 0 : index
    %0 = vector.load %arg3[%c0, %c0_0] : memref<20x1xf32, #tpu.memory_space<vmem>>, vector<20x1xf32>
    %c0_1 = arith.constant 0 : index
    %c0_2 = arith.constant 0 : index
    %c0_3 = arith.constant 0 : index
    %1 = vector.load %arg6[%c0_1, %c0_2, %c0_3] : memref<1x1x384xf32, #tpu.memory_space<vmem>>, vector<1x1x384xf32>
    %2 = vector.shape_cast %1 : vector<1x1x384xf32> to vector<1x384xf32>
    %cst = arith.constant dense<0.000000e+00> : vector<20x384xf32>
    %3 = tpu.matmul %0, %2, %cst {dimension_numbers = #tpu.dot_dimension_numbers<[1], [0], [0], [1], [0, 0, 1, 1], [], []>} : vector<20x1xf32>, vector<1x384xf32>, vector<20x384xf32> -> vector<20x384xf32>
    %c0_4 = arith.constant 0 : index
    %c0_5 = arith.constant 0 : index
    %c0_6 = arith.constant 0 : index
    %c0_7 = arith.constant 0 : index
    %4 = vector.load %arg5[%c0_4, %c0_5, %c0_6, %c0_7] : memref<1x2x15x384xf32, #tpu.memory_space<vmem>>, vector<1x1x15x384xf32>
    %5 = vector.shape_cast %4 : vector<1x1x15x384xf32> to vector<15x384xf32>
    %c0_8 = arith.constant 0 : index
    %c0_9 = arith.constant 0 : index
    %c0_10 = arith.constant 0 : index
    %6 = vector.load %arg2[%c0_8, %c0_9, %c0_10] : memref<2x20x15xf32, #tpu.memory_space<vmem>>, vector<1x20x15xf32>
    %7 = vector.shape_cast %6 : vector<1x20x15xf32> to vector<20x15xf32>
    %cst_11 = arith.constant dense<0.000000e+00> : vector<20x384xf32>
    %8 = tpu.matmul %7, %5, %cst_11 {dimension_numbers = #tpu.dot_dimension_numbers<[1], [0], [0], [1], [0, 0, 1, 1], [], []>} : vector<20x15xf32>, vector<15x384xf32>, vector<20x384xf32> -> vector<20x384xf32>
    %9 = arith.addf %3, %8 : vector<20x384xf32>
    %c0_12 = arith.constant 0 : index
    %c0_13 = arith.constant 0 : index
    %c0_14 = arith.constant 0 : index
    %c0_15 = arith.constant 0 : index
    %10 = vector.load %arg4[%c0_12, %c0_13, %c0_14, %c0_15] : memref<2x2x15x1xf32, #tpu.memory_space<vmem>>, vector<1x1x15x1xf32>
    %11 = vector.shape_cast %10 : vector<1x1x15x1xf32> to vector<15x1xf32>
    %12 = vector.broadcast %11 : vector<15x1xf32> to vector<15x384xf32>
    %13 = arith.mulf %5, %12 : vector<15x384xf32>
    %14 = arith.truncf %13 : vector<15x384xf32> to vector<15x384xbf16>
    %c0_16 = arith.constant 0 : index
    %c0_17 = arith.constant 0 : index
    %c0_18 = arith.constant 0 : index
    %c0_19 = arith.constant 0 : index
    %c0_20 = arith.constant 0 : index
    %15 = vector.load %arg8[%c0_16, %c0_17, %c0_18, %c0_19, %c0_20] : memref<1x2x2x15x384xbf16, #tpu.memory_space<vmem>>, vector<1x1x1x15x384xbf16>
    %16 = vector.shape_cast %15 : vector<1x1x1x15x384xbf16> to vector<15x384xbf16>
    %17 = vector.shape_cast %14 : vector<15x384xbf16> to vector<1x1x1x15x384xbf16>
    tpu.vector_store %arg8[%c0_16, %c0_17, %c0_18, %c0_19, %c0_20], %17 {strides = array<i32>} : memref<1x2x2x15x384xbf16, #tpu.memory_space<vmem>>, vector<1x1x1x15x384xbf16>,
    %c0_21 = arith.constant 0 : index
    %c1 = arith.constant 1 : index
    %c0_22 = arith.constant 0 : index
    %c0_23 = arith.constant 0 : index
    %18 = vector.load %arg4[%c0_21, %c1, %c0_22, %c0_23] : memref<2x2x15x1xf32, #tpu.memory_space<vmem>>, vector<1x1x15x1xf32>
    %19 = vector.shape_cast %18 : vector<1x1x15x1xf32> to vector<15x1xf32>
    %20 = vector.broadcast %19 : vector<15x1xf32> to vector<15x384xf32>
    %21 = arith.mulf %5, %20 : vector<15x384xf32>
    %22 = arith.truncf %21 : vector<15x384xf32> to vector<15x384xbf16>
    %c0_24 = arith.constant 0 : index
    %c0_25 = arith.constant 0 : index
    %c1_26 = arith.constant 1 : index
    %c0_27 = arith.constant 0 : index
    %c0_28 = arith.constant 0 : index
    %23 = vector.load %arg8[%c0_24, %c0_25, %c1_26, %c0_27, %c0_28] : memref<1x2x2x15x384xbf16, #tpu.memory_space<vmem>>, vector<1x1x1x15x384xbf16>
    %24 = vector.shape_cast %23 : vector<1x1x1x15x384xbf16> to vector<15x384xbf16>
    %25 = vector.shape_cast %22 : vector<15x384xbf16> to vector<1x1x1x15x384xbf16>
    tpu.vector_store %arg8[%c0_24, %c0_25, %c1_26, %c0_27, %c0_28], %25 {strides = array<i32>} : memref<1x2x2x15x384xbf16, #tpu.memory_space<vmem>>, vector<1x1x1x15x384xbf16>,
    %c0_29 = arith.constant 0 : index
    %c1_30 = arith.constant 1 : index
    %c0_31 = arith.constant 0 : index
    %c0_32 = arith.constant 0 : index
    %26 = vector.load %arg5[%c0_29, %c1_30, %c0_31, %c0_32] : memref<1x2x15x384xf32, #tpu.memory_space<vmem>>, vector<1x1x15x384xf32>
    %27 = vector.shape_cast %26 : vector<1x1x15x384xf32> to vector<15x384xf32>
    %c1_33 = arith.constant 1 : index
    %c0_34 = arith.constant 0 : index
    %c0_35 = arith.constant 0 : index
    %28 = vector.load %arg2[%c1_33, %c0_34, %c0_35] : memref<2x20x15xf32, #tpu.memory_space<vmem>>, vector<1x20x15xf32>
    %29 = vector.shape_cast %28 : vector<1x20x15xf32> to vector<20x15xf32>
    %cst_36 = arith.constant dense<0.000000e+00> : vector<20x384xf32>
    %30 = tpu.matmul %29, %27, %cst_36 {dimension_numbers = #tpu.dot_dimension_numbers<[1], [0], [0], [1], [0, 0, 1, 1], [], []>} : vector<20x15xf32>, vector<15x384xf32>, vector<20x384xf32> -> vector<20x384xf32>
    %31 = arith.addf %9, %30 : vector<20x384xf32>
    %c1_37 = arith.constant 1 : index
    %c0_38 = arith.constant 0 : index
    %c0_39 = arith.constant 0 : index
    %c0_40 = arith.constant 0 : index
    %32 = vector.load %arg4[%c1_37, %c0_38, %c0_39, %c0_40] : memref<2x2x15x1xf32, #tpu.memory_space<vmem>>, vector<1x1x15x1xf32>
    %33 = vector.shape_cast %32 : vector<1x1x15x1xf32> to vector<15x1xf32>
    %34 = vector.broadcast %33 : vector<15x1xf32> to vector<15x384xf32>
    %35 = arith.mulf %27, %34 : vector<15x384xf32>
    %36 = arith.truncf %35 : vector<15x384xf32> to vector<15x384xbf16>
    %c0_41 = arith.constant 0 : index
    %c1_42 = arith.constant 1 : index
    %c0_43 = arith.constant 0 : index
    %c0_44 = arith.constant 0 : index
    %c0_45 = arith.constant 0 : index
    %37 = vector.load %arg8[%c0_41, %c1_42, %c0_43, %c0_44, %c0_45] : memref<1x2x2x15x384xbf16, #tpu.memory_space<vmem>>, vector<1x1x1x15x384xbf16>
    %38 = vector.shape_cast %37 : vector<1x1x1x15x384xbf16> to vector<15x384xbf16>
    %39 = vector.shape_cast %36 : vector<15x384xbf16> to vector<1x1x1x15x384xbf16>
    tpu.vector_store %arg8[%c0_41, %c1_42, %c0_43, %c0_44, %c0_45], %39 {strides = array<i32>} : memref<1x2x2x15x384xbf16, #tpu.memory_space<vmem>>, vector<1x1x1x15x384xbf16>,
    %c1_46 = arith.constant 1 : index
    %c1_47 = arith.constant 1 : index
    %c0_48 = arith.constant 0 : index
    %c0_49 = arith.constant 0 : index
    %40 = vector.load %arg4[%c1_46, %c1_47, %c0_48, %c0_49] : memref<2x2x15x1xf32, #tpu.memory_space<vmem>>, vector<1x1x15x1xf32>
    %41 = vector.shape_cast %40 : vector<1x1x15x1xf32> to vector<15x1xf32>
    %42 = vector.broadcast %41 : vector<15x1xf32> to vector<15x384xf32>
    %43 = arith.mulf %27, %42 : vector<15x384xf32>
    %44 = arith.truncf %43 : vector<15x384xf32> to vector<15x384xbf16>
    %c0_50 = arith.constant 0 : index
    %c1_51 = arith.constant 1 : index
    %c1_52 = arith.constant 1 : index
    %c0_53 = arith.constant 0 : index
    %c0_54 = arith.constant 0 : index
    %45 = vector.load %arg8[%c0_50, %c1_51, %c1_52, %c0_53, %c0_54] : memref<1x2x2x15x384xbf16, #tpu.memory_space<vmem>>, vector<1x1x1x15x384xbf16>
    %46 = vector.shape_cast %45 : vector<1x1x1x15x384xbf16> to vector<15x384xbf16>
    %47 = vector.shape_cast %44 : vector<15x384xbf16> to vector<1x1x1x15x384xbf16>
    tpu.vector_store %arg8[%c0_50, %c1_51, %c1_52, %c0_53, %c0_54], %47 {strides = array<i32>} : memref<1x2x2x15x384xbf16, #tpu.memory_space<vmem>>, vector<1x1x1x15x384xbf16>,
    %48 = arith.truncf %31 : vector<20x384xf32> to vector<20x384xbf16>
    %c0_55 = arith.constant 0 : index
    %c0_56 = arith.constant 0 : index
    %c0_57 = arith.constant 0 : index
    %49 = vector.load %arg7[%c0_55, %c0_56, %c0_57] : memref<1x20x384xbf16, #tpu.memory_space<vmem>>, vector<1x20x384xbf16>
    %50 = vector.shape_cast %49 : vector<1x20x384xbf16> to vector<20x384xbf16>
    %51 = vector.shape_cast %48 : vector<20x384xbf16> to vector<1x20x384xbf16>
    tpu.vector_store %arg7[%c0_55, %c0_56, %c0_57], %51 {strides = array<i32>} : memref<1x20x384xbf16, #tpu.memory_space<vmem>>, vector<1x20x384xbf16>,
    return
  }
  func.func @transform_0(%arg0: i32, %arg1: i32) -> (i32, i32, i32) {
    %c0_i32 = arith.constant 0 : i32
    %c0_i32_0 = arith.constant 0 : i32
    %c0_i32_1 = arith.constant 0 : i32
    %c0_i32_2 = arith.constant 0 : i32
    return %c0_i32, %c0_i32_0, %c0_i32_1 : i32, i32, i32
  }
  func.func @transform_1(%arg0: i32, %arg1: i32) -> (i32, i32) {
    %c0_i32 = arith.constant 0 : i32
    %c0_i32_0 = arith.constant 0 : i32
    %c0_i32_1 = arith.constant 0 : i32
    return %c0_i32, %c0_i32_0 : i32, i32
  }
  func.func @transform_2(%arg0: i32, %arg1: i32) -> (i32, i32, i32, i32) {
    %c0_i32 = arith.constant 0 : i32
    %c0_i32_0 = arith.constant 0 : i32
    %c0_i32_1 = arith.constant 0 : i32
    %c0_i32_2 = arith.constant 0 : i32
    %c0_i32_3 = arith.constant 0 : i32
    return %c0_i32, %c0_i32_0, %c0_i32_1, %c0_i32_2 : i32, i32, i32, i32
  }
  func.func @transform_3(%arg0: i32, %arg1: i32) -> (i32, i32, i32, i32) {
    %c0_i32 = arith.constant 0 : i32
    %c0_i32_0 = arith.constant 0 : i32
    %c0_i32_1 = arith.constant 0 : i32
    return %arg1, %c0_i32, %c0_i32_0, %arg0 : i32, i32, i32, i32
  }
  func.func @transform_4(%arg0: i32, %arg1: i32) -> (i32, i32, i32) {
    %c0_i32 = arith.constant 0 : i32
    %c0_i32_0 = arith.constant 0 : i32
    return %arg1, %c0_i32, %arg0 : i32, i32, i32
  }
  func.func @transform_5(%arg0: i32, %arg1: i32) -> (i32, i32, i32) {
    %c0_i32 = arith.constant 0 : i32
    %c0_i32_0 = arith.constant 0 : i32
    return %arg1, %c0_i32, %arg0 : i32, i32, i32
  }
  func.func @transform_6(%arg0: i32, %arg1: i32) -> (i32, i32, i32, i32, i32) {
    %c0_i32 = arith.constant 0 : i32
    %c0_i32_0 = arith.constant 0 : i32
    %c0_i32_1 = arith.constant 0 : i32
    %c0_i32_2 = arith.constant 0 : i32
    return %arg1, %c0_i32, %c0_i32_0, %c0_i32_1, %arg0 : i32, i32, i32, i32, i32
  }
}

</mosaic_0001>

<llo_original>
// kernel: tpu_custom_call.1
$region0: #{tpu_custom_call.1}
  #allocation0 [shape = 'u32[]', space=smem, size = 0x4, offset = 0x4, fixed_abs, tag = 'smem constant byte address 0x4 - core index']
  #allocation1 [shape = 'u32[144,128]{1,0:T(1,128)}', space=vmem, size = 0x12000, scoped, tag = 'internal scratch']
  %s0 = inlined_call_operand.vmem [shape: f32[2,20,15], index: 0, kind: input, shape index: {}]
  %s1 = inlined_call_operand.vmem [shape: f32[20,1], index: 1, kind: input, shape index: {}]
  %s2 = inlined_call_operand.vmem [shape: f32[2,2,15,1], index: 2, kind: input, shape index: {}]
  %s3 = inlined_call_operand.vmem [shape: f32[2,2,15,360], index: 3, kind: input, shape index: {}]
  %s4 = inlined_call_operand.vmem [shape: f32[2,1,360], index: 4, kind: input, shape index: {}]
  %s5 = inlined_call_operand.vmem [shape: bf16[2,20,360], index: 5, kind: output, shape index: {0}]
  %s6 = inlined_call_operand.vmem [shape: bf16[2,2,2,15,360], index: 6, kind: output, shape index: {1}]
  %7 = xla_tuple %s5, %s6
  %s8 = sld [smem:[#allocation0]]
  $region61: #{tpu_custom_call.1} parent=0
    _
  %s10 = ssub.s32 1, %s8
  %s11 = scalar_select 0, %s10, %s8
  loop: start=0, step=1, limit=4
  $region2: #{tpu_custom_call.1} parent=0 // loop_pre_header
    _
  $region3: #{tpu_custom_call.1} parent=0 // loop_header
    %s13 = sphi 0, %s17
    %p14 = scmp.ge.s32.totalorder %s13, 4
    %s20 = sphi 0, %s32
    %s21 = sphi 0, %s28
    %s22 = sphi 0, %s20
    %s23 = sphi 0, %s21
    %s24 = sphi 0, %s22
    %s25 = sphi 0, %s23
    %s33 = sphi 0, %s33
    %s35 = sphi 0, %s33
    %s36 = sphi 0, %s35
    %s50 = sphi 0, %s36
    %s54 = sphi 0, %s54
    %s56 = sphi 0, %s54
    %s57 = sphi 0, %s56
    %s71 = sphi 0, %s57
    %s75 = sphi 0, %s75
    %s77 = sphi 0, %s75
    %s78 = sphi 0, %s77
    %s92 = sphi 0, %s78
    %s100 = sphi 0, %s102
    %s103 = sphi 0, %s100
    %s104 = sphi 0, %s103
    %s120 = sphi 0, %s104
    %s128 = sphi 0, %s130
    %s131 = sphi 0, %s128
    %s132 = sphi 0, %s131
    %s148 = sphi 0, %s132
    %s156 = sphi 0, %s158
    %s159 = sphi 0, %s156
    %s160 = sphi 0, %s159
    %s176 = sphi 0, %s160
    %s184 = sphi 0, %s186
    %s187 = sphi 0, %s184
    %s188 = sphi 0, %s187
    %s204 = sphi 0, %s188
  $region4: #{tpu_custom_call.1} parent=0 // loop_header_branch
    %16 = sbr.rel (%p14) target = $region8
  $region5: #{tpu_custom_call.1} parent=0 // loop_body
    %s18 = ssub.s32 %s13, 1
    %s19 = ssub.s32 %s13, 2
    %s26 = sadd.s32 1, %s21
    %p27 = scmp.ge.s32.totalorder %s26, 2
    %s28 = scalar_select %p27, 0, %s26
    %s29 = sadd.s32 1, %s20
    %s30 = scalar_select %p27, %s29, %s20
    %p31 = scmp.ge.s32.totalorder %s30, 1
    %s32 = scalar_select %p31, 0, %s30
    %s34 = sadd.s32 %s33, 1
    %p37 = scmp.eq.s32.totalorder %s13, 1
    %p38 = scmp.ne.s32.totalorder %s33, %s35
    %p39 = scmp.eq.s32.totalorder %s13, 0
    %p40 = por %p38, %p39
    %p41 = scmp.ne.s32.totalorder %s33, %s35
    %p42 = scmp.eq.s32.totalorder %s18, 1
    %p43 = por %p41, %p42
    %p44 = scmp.ne.s32.totalorder %s35, %s36
    %p45 = scmp.eq.s32.totalorder %s18, 0
    %p46 = por %p44, %p45
    %p47 = scmp.ne.s32.totalorder %s35, %s36
    %p48 = scmp.eq.s32.totalorder %s19, 1
    %p49 = por %p47, %p48
    %p51 = scmp.ne.s32.totalorder %s36, %s50
    %p52 = scmp.eq.s32.totalorder %s19, 0
    %p53 = por %p51, %p52
    %s55 = sadd.s32 %s54, 1
    %p58 = scmp.eq.s32.totalorder %s13, 1
    %p59 = scmp.ne.s32.totalorder %s54, %s56
    %p60 = scmp.eq.s32.totalorder %s13, 0
    %p61 = por %p59, %p60
    %p62 = scmp.ne.s32.totalorder %s54, %s56
    %p63 = scmp.eq.s32.totalorder %s18, 1
    %p64 = por %p62, %p63
    %p65 = scmp.ne.s32.totalorder %s56, %s57
    %p66 = scmp.eq.s32.totalorder %s18, 0
    %p67 = por %p65, %p66
    %p68 = scmp.ne.s32.totalorder %s56, %s57
    %p69 = scmp.eq.s32.totalorder %s19, 1
    %p70 = por %p68, %p69
    %p72 = scmp.ne.s32.totalorder %s57, %s71
    %p73 = scmp.eq.s32.totalorder %s19, 0
    %p74 = por %p72, %p73
    %s76 = sadd.s32 %s75, 1
    %p79 = scmp.eq.s32.totalorder %s13, 1
    %p80 = scmp.ne.s32.totalorder %s75, %s77
    %p81 = scmp.eq.s32.totalorder %s13, 0
    %p82 = por %p80, %p81
    %p83 = scmp.ne.s32.totalorder %s75, %s77
    %p84 = scmp.eq.s32.totalorder %s18, 1
    %p85 = por %p83, %p84
    %p86 = scmp.ne.s32.totalorder %s77, %s78
    %p87 = scmp.eq.s32.totalorder %s18, 0
    %p88 = por %p86, %p87
    %p89 = scmp.ne.s32.totalorder %s77, %s78
    %p90 = scmp.eq.s32.totalorder %s19, 1
    %p91 = por %p89, %p90
    %p93 = scmp.ne.s32.totalorder %s78, %s92
    %p94 = scmp.eq.s32.totalorder %s19, 0
    %p95 = por %p93, %p94
    %s96 = ssub.s32 %s21, %s28
    %s97 = ssub.s32 %s20, %s32
    %s98 = sor.u32 %s96, %s97
    %p99 = scmp.eq.s32.totalorder %s98, 0
    %s101 = sadd.s32 %s100, 1
    %s102 = scalar_select %p99, %s100, %s101
    %p105 = pneg %p99
    %p106 = scmp.eq.s32.totalorder %s13, 1
    %p107 = por %p105, %p106
    %p108 = scmp.ne.s32.totalorder %s100, %s103
    %p109 = scmp.eq.s32.totalorder %s13, 0
    %p110 = por %p108, %p109
    %p111 = scmp.ne.s32.totalorder %s100, %s103
    %p112 = scmp.eq.s32.totalorder %s18, 1
    %p113 = por %p111, %p112
    %p114 = scmp.ne.s32.totalorder %s103, %s104
    %p115 = scmp.eq.s32.totalorder %s18, 0
    %p116 = por %p114, %p115
    %p117 = scmp.ne.s32.totalorder %s103, %s104
    %p118 = scmp.eq.s32.totalorder %s19, 1
    %p119 = por %p117, %p118
    %p121 = scmp.ne.s32.totalorder %s104, %s120
    %p122 = scmp.eq.s32.totalorder %s19, 0
    %p123 = por %p121, %p122
    %s124 = ssub.s32 %s21, %s28
    %s125 = ssub.s32 %s20, %s32
    %s126 = sor.u32 %s124, %s125
    %p127 = scmp.eq.s32.totalorder %s126, 0
    %s129 = sadd.s32 %s128, 1
    %s130 = scalar_select %p127, %s128, %s129
    %p133 = pneg %p127
    %p134 = scmp.eq.s32.totalorder %s13, 1
    %p135 = por %p133, %p134
    %p136 = scmp.ne.s32.totalorder %s128, %s131
    %p137 = scmp.eq.s32.totalorder %s13, 0
    %p138 = por %p136, %p137
    %p139 = scmp.ne.s32.totalorder %s128, %s131
    %p140 = scmp.eq.s32.totalorder %s18, 1
    %p141 = por %p139, %p140
    %p142 = scmp.ne.s32.totalorder %s131, %s132
    %p143 = scmp.eq.s32.totalorder %s18, 0
    %p144 = por %p142, %p143
    %p145 = scmp.ne.s32.totalorder %s131, %s132
    %p146 = scmp.eq.s32.totalorder %s19, 1
    %p147 = por %p145, %p146
    %p149 = scmp.ne.s32.totalorder %s132, %s148
    %p150 = scmp.eq.s32.totalorder %s19, 0
    %p151 = por %p149, %p150
    %s152 = ssub.s32 %s21, %s28
    %s153 = ssub.s32 %s20, %s32
    %s154 = sor.u32 %s152, %s153
    %p155 = scmp.eq.s32.totalorder %s154, 0
    %s157 = sadd.s32 %s156, 1
    %s158 = scalar_select %p155, %s156, %s157
    %p161 = pneg %p155
    %p162 = scmp.eq.s32.totalorder %s13, 1
    %p163 = por %p161, %p162
    %p164 = scmp.ne.s32.totalorder %s156, %s159
    %p165 = scmp.eq.s32.totalorder %s13, 0
    %p166 = por %p164, %p165
    %p167 = scmp.ne.s32.totalorder %s156, %s159
    %p168 = scmp.eq.s32.totalorder %s18, 1
    %p169 = por %p167, %p168
    %p170 = scmp.ne.s32.totalorder %s159, %s160
    %p171 = scmp.eq.s32.totalorder %s18, 0
    %p172 = por %p170, %p171
    %p173 = scmp.ne.s32.totalorder %s159, %s160
    %p174 = scmp.eq.s32.totalorder %s19, 1
    %p175 = por %p173, %p174
    %p177 = scmp.ne.s32.totalorder %s160, %s176
    %p178 = scmp.eq.s32.totalorder %s19, 0
    %p179 = por %p177, %p178
    %s180 = ssub.s32 %s21, %s28
    %s181 = ssub.s32 %s20, %s32
    %s182 = sor.u32 %s180, %s181
    %p183 = scmp.eq.s32.totalorder %s182, 0
    %s185 = sadd.s32 %s184, 1
    %s186 = scalar_select %p183, %s184, %s185
    %p189 = pneg %p183
    %p190 = scmp.eq.s32.totalorder %s13, 1
    %p191 = por %p189, %p190
    %p192 = scmp.ne.s32.totalorder %s184, %s187
    %p193 = scmp.eq.s32.totalorder %s13, 0
    %p194 = por %p192, %p193
    %p195 = scmp.ne.s32.totalorder %s184, %s187
    %p196 = scmp.eq.s32.totalorder %s18, 1
    %p197 = por %p195, %p196
    %p198 = scmp.ne.s32.totalorder %s187, %s188
    %p199 = scmp.eq.s32.totalorder %s18, 0
    %p200 = por %p198, %p199
    %p201 = scmp.ne.s32.totalorder %s187, %s188
    %p202 = scmp.eq.s32.totalorder %s19, 1
    %p203 = por %p201, %p202
    %p205 = scmp.ne.s32.totalorder %s188, %s204
    %p206 = scmp.eq.s32.totalorder %s19, 0
    %p207 = por %p205, %p206
    %p208 = scmp.le.s32.totalorder 1, %s13
    %p209 = scmp.lt.s32.totalorder %s13, 3
    %p210 = pnand %p208, %p209
    %p211 = pneg %p210
    // Predicated region
    $region9: #{tpu_custom_call.1} parent=5 // pred_check
      _
    $region10: #{tpu_custom_call.1} parent=5 // pred_check_branch
      %213 = sbr.rel (%p210) target = $region12
    $region11: #{tpu_custom_call.1} parent=5 // pred_region
      %s214 = ssub.s32 %s13, 1
      // Predicated region
      $region13: #{tpu_custom_call.1} parent=11 // pred_check
        %p215 = pneg %p46
      $region14: #{tpu_custom_call.1} parent=11 // pred_check_branch
        %217 = sbr.rel (%p215) target = $region16
      $region15: #{tpu_custom_call.1} parent=11 // pred_region
        _
      $region16: #{tpu_custom_call.1} parent=11 // pred_fallthru
        _
      // Predicated region
      $region17: #{tpu_custom_call.1} parent=11 // pred_check
        %p218 = pneg %p67
      $region18: #{tpu_custom_call.1} parent=11 // pred_check_branch
        %220 = sbr.rel (%p218) target = $region20
      $region19: #{tpu_custom_call.1} parent=11 // pred_region
        _
      $region20: #{tpu_custom_call.1} parent=11 // pred_fallthru
        _
      // Predicated region
      $region21: #{tpu_custom_call.1} parent=11 // pred_check
        %p221 = pneg %p88
      $region22: #{tpu_custom_call.1} parent=11 // pred_check_branch
        %223 = sbr.rel (%p221) target = $region24
      $region23: #{tpu_custom_call.1} parent=11 // pred_region
        _
      $region24: #{tpu_custom_call.1} parent=11 // pred_fallthru
        _
    $region12: #{tpu_custom_call.1} parent=5 // pred_fallthru
      _
    %p224 = scmp.lt.s32.totalorder %s13, 2
    // Predicated region
    $region25: #{tpu_custom_call.1} parent=5 // pred_check
      %p225 = pneg %p224
    $region26: #{tpu_custom_call.1} parent=5 // pred_check_branch
      %227 = sbr.rel (%p225) target = $region28
    $region27: #{tpu_custom_call.1} parent=5 // pred_region
      // Predicated region
      $region29: #{tpu_custom_call.1} parent=27 // pred_check
        %p228 = pneg %p110
      $region30: #{tpu_custom_call.1} parent=27 // pred_check_branch
        %230 = sbr.rel (%p228) target = $region32
      $region31: #{tpu_custom_call.1} parent=27 // pred_region
        %s231 = smul.u32 3, %s20
        %p232 = scmp.lt.s32.totalorder %s21, 1
        %s233 = scalar_select %p232, %s21, 1
        %p234 = scmp.lt.s32.totalorder %s231, 2
        %s235 = scalar_select %p234, %s231, 2
        %s236 = smul.addr %s233, 12
        %s237 = sadd.s32 %s235, %s236
        %s238 = smul.addr %s237, 8
        %s239 = scalar_lea.vmem %s3, %s238
        %s240 = smul.u32 3, %s20
      $region32: #{tpu_custom_call.1} parent=27 // pred_fallthru
        _
      // Predicated region
      $region33: #{tpu_custom_call.1} parent=27 // pred_check
        %p241 = pneg %p138
      $region34: #{tpu_custom_call.1} parent=27 // pred_check_branch
        %243 = sbr.rel (%p241) target = $region36
      $region35: #{tpu_custom_call.1} parent=27 // pred_region
        %s244 = smul.u32 3, %s20
        %p245 = scmp.lt.s32.totalorder %s21, 1
        %s246 = scalar_select %p245, %s21, 1
        %p247 = scmp.lt.s32.totalorder %s244, 2
        %s248 = scalar_select %p247, %s244, 2
        %s249 = smul.addr %s246, 3
        %s250 = sadd.s32 %s248, %s249
        %s251 = scalar_lea.vmem %s4, %s250
        %s252 = smul.u32 3, %s20
      $region36: #{tpu_custom_call.1} parent=27 // pred_fallthru
        _
    $region28: #{tpu_custom_call.1} parent=5 // pred_fallthru
      _
    %p253 = scmp.le.s32.totalorder 1, %s13
    %p254 = scmp.lt.s32.totalorder %s13, 3
    %p255 = pnand %p253, %p254
    %p256 = pneg %p255
    // Predicated region
    $region37: #{tpu_custom_call.1} parent=5 // pred_check
      _
    $region38: #{tpu_custom_call.1} parent=5 // pred_check_branch
      %258 = sbr.rel (%p255) target = $region40
    $region39: #{tpu_custom_call.1} parent=5 // pred_region
      %s259 = ssub.s32 %s13, 1
      %p260 = pneg %p46
      %p261 = pneg %p43
      %p262 = pneg %p67
      %p263 = pneg %p64
      %p264 = pneg %p88
      %p265 = pneg %p85
      %s266 = smul.u32 3, %s22
      %p267 = scmp.lt.s32.totalorder %s23, 1
      %s268 = scalar_select %p267, %s23, 1
      %p269 = scmp.lt.s32.totalorder %s266, 2
      %s270 = scalar_select %p269, %s266, 2
      %s271 = smul.addr %s268, 12
      %s272 = sadd.s32 %s270, %s271
      %s273 = smul.addr %s272, 8
      %s274 = scalar_lea.vmem %s3, %s273
      %p275 = pneg %p116
      %p276 = pneg %p113
      %s277 = smul.u32 3, %s22
      %p278 = scmp.lt.s32.totalorder %s23, 1
      %s279 = scalar_select %p278, %s23, 1
      %p280 = scmp.lt.s32.totalorder %s277, 2
      %s281 = scalar_select %p280, %s277, 2
      %s282 = smul.addr %s279, 3
      %s283 = sadd.s32 %s281, %s282
      %s284 = scalar_lea.vmem %s4, %s283
      %p285 = pneg %p144
      %p286 = pneg %p141
      %p287 = pneg %p172
      %p288 = pneg %p169
      %s289 = smul.u32 3, %s22
      %p290 = scmp.lt.s32.totalorder %s23, 1
      %s291 = scalar_select %p290, %s23, 1
      %p292 = scmp.lt.s32.totalorder %s289, 2
      %s293 = scalar_select %p292, %s289, 2
      %s294 = smul.addr %s291, 9
      %s295 = sadd.s32 %s293, %s294
      %s296 = smul.addr %s295, 4
      %s297 = scalar_lea.vmem %s5, %s296
      %p298 = pneg %p200
      %p299 = pneg %p197
      %s300 = smul.u32 3, %s22
      %p301 = scmp.lt.s32.totalorder %s23, 1
      %s302 = scalar_select %p301, %s23, 1
      %p303 = scmp.lt.s32.totalorder %s300, 2
      %s304 = scalar_select %p303, %s300, 2
      %s305 = smul.addr %s302, 24
      %s306 = sadd.s32 %s304, %s305
      %s307 = smul.addr %s306, 4
      %s308 = scalar_lea.vmem %s6, %s307
      %s309 = smul.u32 3, %s22
      %p310 = scmp.lt.s32.totalorder %s23, 1
      %s311 = scalar_select %p310, %s23, 1
      %p312 = scmp.lt.s32.totalorder %s309, 2
      %s313 = scalar_select %p312, %s309, 2
      %s314 = smul.addr %s311, 12
      %s315 = sadd.s32 %s313, %s314
      %s316 = smul.addr %s315, 8
      %s317 = scalar_lea.vmem %s3, %s316
      %s318 = smul.u32 3, %s22
      %s319 = smul.u32 3, %s22
      %p320 = scmp.lt.s32.totalorder %s23, 1
      %s321 = scalar_select %p320, %s23, 1
      %p322 = scmp.lt.s32.totalorder %s319, 2
      %s323 = scalar_select %p322, %s319, 2
      %s324 = smul.addr %s321, 3
      %s325 = sadd.s32 %s323, %s324
      %s326 = scalar_lea.vmem %s4, %s325
      %s327 = smul.u32 3, %s22
      %s328 = smul.u32 3, %s22
      %p329 = scmp.lt.s32.totalorder %s23, 1
      %s330 = scalar_select %p329, %s23, 1
      %p331 = scmp.lt.s32.totalorder %s328, 2
      %s332 = scalar_select %p331, %s328, 2
      %s333 = smul.addr %s330, 9
      %s334 = sadd.s32 %s332, %s333
      %s335 = smul.addr %s334, 4
      %s336 = scalar_lea.vmem %s5, %s335
      %s337 = smul.u32 3, %s22
      %s338 = smul.u32 3, %s22
      %p339 = scmp.lt.s32.totalorder %s23, 1
      %s340 = scalar_select %p339, %s23, 1
      %p341 = scmp.lt.s32.totalorder %s338, 2
      %s342 = scalar_select %p341, %s338, 2
      %s343 = smul.addr %s340, 24
      %s344 = sadd.s32 %s342, %s343
      %s345 = smul.addr %s344, 4
      %s346 = scalar_lea.vmem %s6, %s345
      %s347 = smul.u32 3, %s22
      %v348 = vld [vmem:[%s1] sm:$0xff]
      %v349 = vld [vmem:[%s1 + $0x8] sm:$0xff]
      %v350 = vld [vmem:[%s1 + $0x10] sm:$0xf]
      %v351 = vld [vmem:[%s326] sm:$0x7]
      %v352 = vld [vmem:[%s317] sm:$0xff]
      %v353 = vld [vmem:[%s317 + $0x8] sm:$0xff]
      %v354 = vld [vmem:[%s317 + $0x10] sm:$0xff]
      %v355 = vld [vmem:[%s317 + $0x18] sm:$0x7f]
      %v356 = vld [vmem:[%s317 + $0x20] sm:$0x7f]
      %v357 = vld [vmem:[%s317 + $0x28] sm:$0x7f]
      %v358 = vld [vmem:[%s0] sm:$0xff]
      %v359 = vld [vmem:[%s0 + $0x8] sm:$0xff]
      %v360 = vld [vmem:[%s0 + $0x10] sm:$0xf]
      %vm361 = vcmask 121856
      %v363 = vsel %vm361, %v358, 0
      %v366 = vsel %vm361, %v359, 0
      %v369 = vsel %vm361, %v360, 0
      %vm371 = vcmask 1046528
      %v373 = vsel %vm371, %v355, 0
      %v376 = vsel %vm371, %v356, 0
      %v379 = vsel %vm371, %v357, 0
      %381 = vmatprep.subr.mxu0 %v353
      %382 = vmatpush1.msra.mxu0 %v352
      %383 = vmatprep.subr.mxu0 %v376
      %384 = vmatpush1.msra.mxu0 %v373
      %385 = vmatprep.subr.mxu0 0.0
      %386 = vmatpush1.msra.mxu0 0.0
      %387 = vmatprep.subr.mxu0 0.0
      %388 = vmatpush1.msra.mxu0 0.0
      %389 = vmatprep.subr.mxu0 0.0
      %390 = vmatpush1.msra.mxu0 0.0
      %391 = vmatprep.subr.mxu0 0.0
      %392 = vmatpush1.msra.mxu0 0.0
      %393 = vmatprep.subr.mxu0 0.0
      %394 = vmatpush1.msra.mxu0 0.0
      %395 = vmatprep.subr.mxu0 0.0
      %396 = vmatpush1.msra.mxu0 0.0
      %397 = vmatprep.subr.mxu0 0.0
      %398 = vmatpush1.msra.mxu0 0.0
      %399 = vmatprep.subr.mxu0 0.0
      %400 = vmatpush1.msra.mxu0 0.0
      %401 = vmatprep.subr.mxu0 0.0
      %402 = vmatpush1.msra.mxu0 0.0
      %403 = vmatprep.subr.mxu0 0.0
      %404 = vmatpush1.msra.mxu0 0.0
      %405 = vmatprep.subr.mxu0 0.0
      %406 = vmatpush1.msra.mxu0 0.0
      %407 = vmatprep.subr.mxu0 0.0
      %408 = vmatpush1.msra.mxu0 0.0
      %409 = vmatprep.subr.mxu0 0.0
      %410 = vmatpush1.msra.mxu0 0.0
      %411 = vmatprep.subr.mxu0 0.0
      %412 = vmatpush1.msra.mxu0 0.0
      %413 = vmatprep.subr.mxu0 0.0
      %414 = vmatpush1.msra.mxu0 0.0
      %415 = vmatprep.subr.mxu0 0.0
      %416 = vmatpush1.msra.mxu0 0.0
      %417 = vmatprep.subr.mxu0 0.0
      %418 = vmatpush1.msra.mxu0 0.0
      %419 = vmatprep.subr.mxu0 0.0
      %420 = vmatpush1.msra.mxu0 0.0
      %421 = vmatprep.subr.mxu0 0.0
      %422 = vmatpush1.msra.mxu0 0.0
      %423 = vmatprep.subr.mxu0 0.0
      %424 = vmatpush1.msra.mxu0 0.0
      %425 = vmatprep.subr.mxu0 0.0
      %426 = vmatpush1.msra.mxu0 0.0
      %427 = vmatprep.subr.mxu0 0.0
      %428 = vmatpush1.msra.mxu0 0.0
      %429 = vmatprep.subr.mxu0 0.0
      %430 = vmatpush1.msra.mxu0 0.0
      %431 = vmatprep.subr.mxu0 0.0
      %432 = vmatpush1.msra.mxu0 0.0
      %433 = vmatprep.subr.mxu0 0.0
      %434 = vmatpush1.msra.mxu0 0.0
      %435 = vmatprep.subr.mxu0 0.0
      %436 = vmatpush1.msra.mxu0 0.0
      %437 = vmatprep.subr.mxu0 0.0
      %438 = vmatpush1.msra.mxu0 0.0
      %439 = vmatprep.subr.mxu0 0.0
      %440 = vmatpush1.msra.mxu0 0.0
      %441 = vmatprep.subr.mxu0 0.0
      %442 = vmatpush1.msra.mxu0 0.0
      %443 = vmatprep.subr.mxu0 0.0
      %444 = vmatpush1.msra.mxu0 0.0
      %445 = vmatprep.mubr.f32.mxu0 0.0
      %446 = vmatmul.mubr.f32.gmra.mrb[0].mxu0 %v363
      %v447 = vpop.f32.mrb[0].mxu0
      %v448 = vadd.f32 0.0, %v447
      %v449 = vpop.f32.mrb[0].mxu0
      %v450 = vadd.f32 0.0, %v449
      %451 = vmatprep.mubr.f32.mxu0 0.0
      %452 = vmatmul.mubr.f32.gmra.mrb[0].mxu0 %v366
      %v453 = vpop.f32.mrb[0].mxu0
      %v454 = vadd.f32 0.0, %v453
      %v455 = vpop.f32.mrb[0].mxu0
      %v456 = vadd.f32 0.0, %v455
      %457 = vmatprep.mubr.f32.mxu0 0.0
      %458 = vmatmul.mubr.f32.gmra.mrb[0].mxu0 %v369
      %v459 = vpop.f32.mrb[0].mxu0
      %v460 = vadd.f32 0.0, %v459
      %v461 = vpop.f32.mrb[0].mxu0
      %v462 = vadd.f32 0.0, %v461
      %463 = vdwg.mxu0
      %464 = vmatprep.subr.mxu0 0.0
      %465 = vmatpush1.msra.mxu0 %v354
      %466 = vmatprep.subr.mxu0 0.0
      %467 = vmatpush1.msra.mxu0 %v379
      %468 = vmatprep.subr.mxu0 0.0
      %469 = vmatpush1.msra.mxu0 0.0
      %470 = vmatprep.subr.mxu0 0.0
      %471 = vmatpush1.msra.mxu0 0.0
      %472 = vmatprep.subr.mxu0 0.0
      %473 = vmatpush1.msra.mxu0 0.0
      %474 = vmatprep.subr.mxu0 0.0
      %475 = vmatpush1.msra.mxu0 0.0
      %476 = vmatprep.subr.mxu0 0.0
      %477 = vmatpush1.msra.mxu0 0.0
      %478 = vmatprep.subr.mxu0 0.0
      %479 = vmatpush1.msra.mxu0 0.0
      %480 = vmatprep.subr.mxu0 0.0
      %481 = vmatpush1.msra.mxu0 0.0
      %482 = vmatprep.subr.mxu0 0.0
      %483 = vmatpush1.msra.mxu0 0.0
      %484 = vmatprep.subr.mxu0 0.0
      %485 = vmatpush1.msra.mxu0 0.0
      %486 = vmatprep.subr.mxu0 0.0
      %487 = vmatpush1.msra.mxu0 0.0
      %488 = vmatprep.subr.mxu0 0.0
      %489 = vmatpush1.msra.mxu0 0.0
      %490 = vmatprep.subr.mxu0 0.0
      %491 = vmatpush1.msra.mxu0 0.0
      %492 = vmatprep.subr.mxu0 0.0
      %493 = vmatpush1.msra.mxu0 0.0
      %494 = vmatprep.subr.mxu0 0.0
      %495 = vmatpush1.msra.mxu0 0.0
      %496 = vmatprep.subr.mxu0 0.0
      %497 = vmatpush1.msra.mxu0 0.0
      %498 = vmatprep.subr.mxu0 0.0
      %499 = vmatpush1.msra.mxu0 0.0
      %500 = vmatprep.subr.mxu0 0.0
      %501 = vmatpush1.msra.mxu0 0.0
      %502 = vmatprep.subr.mxu0 0.0
      %503 = vmatpush1.msra.mxu0 0.0
      %504 = vmatprep.subr.mxu0 0.0
      %505 = vmatpush1.msra.mxu0 0.0
      %506 = vmatprep.subr.mxu0 0.0
      %507 = vmatpush1.msra.mxu0 0.0
      %508 = vmatprep.subr.mxu0 0.0
      %509 = vmatpush1.msra.mxu0 0.0
      %510 = vmatprep.subr.mxu0 0.0
      %511 = vmatpush1.msra.mxu0 0.0
      %512 = vmatprep.subr.mxu0 0.0
      %513 = vmatpush1.msra.mxu0 0.0
      %514 = vmatprep.subr.mxu0 0.0
      %515 = vmatpush1.msra.mxu0 0.0
      %516 = vmatprep.subr.mxu0 0.0
      %517 = vmatpush1.msra.mxu0 0.0
      %518 = vmatprep.subr.mxu0 0.0
      %519 = vmatpush1.msra.mxu0 0.0
      %520 = vmatprep.subr.mxu0 0.0
      %521 = vmatpush1.msra.mxu0 0.0
      %522 = vmatprep.subr.mxu0 0.0
      %523 = vmatpush1.msra.mxu0 0.0
      %524 = vmatprep.subr.mxu0 0.0
      %525 = vmatpush1.msra.mxu0 0.0
      %526 = vmatprep.subr.mxu0 0.0
      %527 = vmatpush1.msra.mxu0 0.0
      %528 = vmatprep.mubr.f32.mxu0 0.0
      %529 = vmatmul.mubr.f32.gmra.mrb[0].mxu0 %v363
      %v530 = vpop.f32.mrb[0].mxu0
      %v531 = vadd.f32 0.0, %v530
      %v532 = vpop.f32.mrb[0].mxu0
      %533 = vmatprep.mubr.f32.mxu0 0.0
      %534 = vmatmul.mubr.f32.gmra.mrb[0].mxu0 %v366
      %v535 = vpop.f32.mrb[0].mxu0
      %v536 = vadd.f32 0.0, %v535
      %v537 = vpop.f32.mrb[0].mxu0
      %538 = vmatprep.mubr.f32.mxu0 0.0
      %539 = vmatmul.mubr.f32.gmra.mrb[0].mxu0 %v369
      %v540 = vpop.f32.mrb[0].mxu0
      %v541 = vadd.f32 0.0, %v540
      %v542 = vpop.f32.mrb[0].mxu0
      %543 = vdwg.mxu0
      %v545 = vlaneseq
      %v546 = vshrl.u32 %v545, 7
      %v547 = vsub.s32 0, %v546
      %v548 = vrot.slane %v351, %v547
      %v549 = vlaneseq
      %v550 = vshrl.u32 %v549, 7
      %v551 = vsub.s32 1, %v550
      %v552 = vrot.slane %v351, %v551
      %v553 = vlaneseq
      %v554 = vshrl.u32 %v553, 7
      %v555 = vsub.s32 2, %v554
      %v556 = vrot.slane %v351, %v555
      %vm557 = vcmask 7168
      %v559 = vsel %vm557, %v348, 0
      %v562 = vsel %vm557, %v349, 0
      %v565 = vsel %vm557, %v350, 0
      %vm567 = vcmask 1040384
      %v568 = vsel %vm567, %v548, 0
      %v570 = vsel %vm567, %v552, 0
      %v572 = vsel %vm567, %v556, 0
      %574 = vmatprep.subr.mxu0 %v570
      %575 = vmatpush1.msra.mxu0 %v568
      %576 = vmatprep.subr.mxu0 0.0
      %577 = vmatpush1.msra.mxu0 0.0
      %578 = vmatprep.subr.mxu0 0.0
      %579 = vmatpush1.msra.mxu0 0.0
      %580 = vmatprep.subr.mxu0 0.0
      %581 = vmatpush1.msra.mxu0 0.0
      %582 = vmatprep.subr.mxu0 0.0
      %583 = vmatpush1.msra.mxu0 0.0
      %584 = vmatprep.subr.mxu0 0.0
      %585 = vmatpush1.msra.mxu0 0.0
      %586 = vmatprep.subr.mxu0 0.0
      %587 = vmatpush1.msra.mxu0 0.0
      %588 = vmatprep.subr.mxu0 0.0
      %589 = vmatpush1.msra.mxu0 0.0
      %590 = vmatprep.subr.mxu0 0.0
      %591 = vmatpush1.msra.mxu0 0.0
      %592 = vmatprep.subr.mxu0 0.0
      %593 = vmatpush1.msra.mxu0 0.0
      %594 = vmatprep.subr.mxu0 0.0
      %595 = vmatpush1.msra.mxu0 0.0
      %596 = vmatprep.subr.mxu0 0.0
      %597 = vmatpush1.msra.mxu0 0.0
      %598 = vmatprep.subr.mxu0 0.0
      %599 = vmatpush1.msra.mxu0 0.0
      %600 = vmatprep.subr.mxu0 0.0
      %601 = vmatpush1.msra.mxu0 0.0
      %602 = vmatprep.subr.mxu0 0.0
      %603 = vmatpush1.msra.mxu0 0.0
      %604 = vmatprep.subr.mxu0 0.0
      %605 = vmatpush1.msra.mxu0 0.0
      %606 = vmatprep.subr.mxu0 0.0
      %607 = vmatpush1.msra.mxu0 0.0
      %608 = vmatprep.subr.mxu0 0.0
      %609 = vmatpush1.msra.mxu0 0.0
      %610 = vmatprep.subr.mxu0 0.0
      %611 = vmatpush1.msra.mxu0 0.0
      %612 = vmatprep.subr.mxu0 0.0
      %613 = vmatpush1.msra.mxu0 0.0
      %614 = vmatprep.subr.mxu0 0.0
      %615 = vmatpush1.msra.mxu0 0.0
      %616 = vmatprep.subr.mxu0 0.0
      %617 = vmatpush1.msra.mxu0 0.0
      %618 = vmatprep.subr.mxu0 0.0
      %619 = vmatpush1.msra.mxu0 0.0
      %620 = vmatprep.subr.mxu0 0.0
      %621 = vmatpush1.msra.mxu0 0.0
      %622 = vmatprep.subr.mxu0 0.0
      %623 = vmatpush1.msra.mxu0 0.0
      %624 = vmatprep.subr.mxu0 0.0
      %625 = vmatpush1.msra.mxu0 0.0
      %626 = vmatprep.subr.mxu0 0.0
      %627 = vmatpush1.msra.mxu0 0.0
      %628 = vmatprep.subr.mxu0 0.0
      %629 = vmatpush1.msra.mxu0 0.0
      %630 = vmatprep.subr.mxu0 0.0
      %631 = vmatpush1.msra.mxu0 0.0
      %632 = vmatprep.subr.mxu0 0.0
      %633 = vmatpush1.msra.mxu0 0.0
      %634 = vmatprep.subr.mxu0 0.0
      %635 = vmatpush1.msra.mxu0 0.0
      %636 = vmatprep.subr.mxu0 0.0
      %637 = vmatpush1.msra.mxu0 0.0
      %638 = vmatprep.mubr.f32.mxu0 0.0
      %639 = vmatmul.mubr.f32.gmra.mrb[0].mxu0 %v559
      %v640 = vpop.f32.mrb[0].mxu0
      %v641 = vadd.f32 %v448, %v640
      %v642 = vpop.f32.mrb[0].mxu0
      %v643 = vadd.f32 %v450, %v642
      %644 = vmatprep.mubr.f32.mxu0 0.0
      %645 = vmatmul.mubr.f32.gmra.mrb[0].mxu0 %v562
      %v646 = vpop.f32.mrb[0].mxu0
      %v647 = vadd.f32 %v454, %v646
      %v648 = vpop.f32.mrb[0].mxu0
      %v649 = vadd.f32 %v456, %v648
      %650 = vmatprep.mubr.f32.mxu0 0.0
      %651 = vmatmul.mubr.f32.gmra.mrb[0].mxu0 %v565
      %v652 = vpop.f32.mrb[0].mxu0
      %v653 = vadd.f32 %v460, %v652
      %v654 = vpop.f32.mrb[0].mxu0
      %v655 = vadd.f32 %v462, %v654
      %656 = vdwg.mxu0
      %657 = vmatprep.subr.mxu0 0.0
      %658 = vmatpush1.msra.mxu0 %v572
      %659 = vmatprep.subr.mxu0 0.0
      %660 = vmatpush1.msra.mxu0 0.0
      %661 = vmatprep.subr.mxu0 0.0
      %662 = vmatpush1.msra.mxu0 0.0
      %663 = vmatprep.subr.mxu0 0.0
      %664 = vmatpush1.msra.mxu0 0.0
      %665 = vmatprep.subr.mxu0 0.0
      %666 = vmatpush1.msra.mxu0 0.0
      %667 = vmatprep.subr.mxu0 0.0
      %668 = vmatpush1.msra.mxu0 0.0
      %669 = vmatprep.subr.mxu0 0.0
      %670 = vmatpush1.msra.mxu0 0.0
      %671 = vmatprep.subr.mxu0 0.0
      %672 = vmatpush1.msra.mxu0 0.0
      %673 = vmatprep.subr.mxu0 0.0
      %674 = vmatpush1.msra.mxu0 0.0
      %675 = vmatprep.subr.mxu0 0.0
      %676 = vmatpush1.msra.mxu0 0.0
      %677 = vmatprep.subr.mxu0 0.0
      %678 = vmatpush1.msra.mxu0 0.0
      %679 = vmatprep.subr.mxu0 0.0
      %680 = vmatpush1.msra.mxu0 0.0
      %681 = vmatprep.subr.mxu0 0.0
      %682 = vmatpush1.msra.mxu0 0.0
      %683 = vmatprep.subr.mxu0 0.0
      %684 = vmatpush1.msra.mxu0 0.0
      %685 = vmatprep.subr.mxu0 0.0
      %686 = vmatpush1.msra.mxu0 0.0
      %687 = vmatprep.subr.mxu0 0.0
      %688 = vmatpush1.msra.mxu0 0.0
      %689 = vmatprep.subr.mxu0 0.0
      %690 = vmatpush1.msra.mxu0 0.0
      %691 = vmatprep.subr.mxu0 0.0
      %692 = vmatpush1.msra.mxu0 0.0
      %693 = vmatprep.subr.mxu0 0.0
      %694 = vmatpush1.msra.mxu0 0.0
      %695 = vmatprep.subr.mxu0 0.0
      %696 = vmatpush1.msra.mxu0 0.0
      %697 = vmatprep.subr.mxu0 0.0
      %698 = vmatpush1.msra.mxu0 0.0
      %699 = vmatprep.subr.mxu0 0.0
      %700 = vmatpush1.msra.mxu0 0.0
      %701 = vmatprep.subr.mxu0 0.0
      %702 = vmatpush1.msra.mxu0 0.0
      %703 = vmatprep.subr.mxu0 0.0
      %704 = vmatpush1.msra.mxu0 0.0
      %705 = vmatprep.subr.mxu0 0.0
      %706 = vmatpush1.msra.mxu0 0.0
      %707 = vmatprep.subr.mxu0 0.0
      %708 = vmatpush1.msra.mxu0 0.0
      %709 = vmatprep.subr.mxu0 0.0
      %710 = vmatpush1.msra.mxu0 0.0
      %711 = vmatprep.subr.mxu0 0.0
      %712 = vmatpush1.msra.mxu0 0.0
      %713 = vmatprep.subr.mxu0 0.0
      %714 = vmatpush1.msra.mxu0 0.0
      %715 = vmatprep.subr.mxu0 0.0
      %716 = vmatpush1.msra.mxu0 0.0
      %717 = vmatprep.subr.mxu0 0.0
      %718 = vmatpush1.msra.mxu0 0.0
      %719 = vmatprep.subr.mxu0 0.0
      %720 = vmatpush1.msra.mxu0 0.0
      %721 = vmatprep.mubr.f32.mxu0 0.0
      %722 = vmatmul.mubr.f32.gmra.mrb[0].mxu0 %v559
      %v723 = vpop.f32.mrb[0].mxu0
      %v724 = vadd.f32 %v531, %v723
      %v725 = vpop.f32.mrb[0].mxu0
      %726 = vmatprep.mubr.f32.mxu0 0.0
      %727 = vmatmul.mubr.f32.gmra.mrb[0].mxu0 %v562
      %v728 = vpop.f32.mrb[0].mxu0
      %v729 = vadd.f32 %v536, %v728
      %v730 = vpop.f32.mrb[0].mxu0
      %731 = vmatprep.mubr.f32.mxu0 0.0
      %732 = vmatmul.mubr.f32.gmra.mrb[0].mxu0 %v565
      %v733 = vpop.f32.mrb[0].mxu0
      %v734 = vadd.f32 %v541, %v733
      %v735 = vpop.f32.mrb[0].mxu0
      %736 = vdwg.mxu0
      %v737 = vld [vmem:[%s2] sm:$0xff]
      %v738 = vld [vmem:[%s2 + $0x8] sm:$0x7f]
      %740 = vset.pattern.permute.xlu0 0
      %741 = vperm.xlu0 %740, %v737
      %v742 = vpop.permute.xlu0 %741
      %745 = vset.pattern.permute.xlu0 0
      %746 = vperm.xlu0 %745, %v738
      %v747 = vpop.permute.xlu0 %746
      %v749 = vmul.f32 %v352, %v742
      %v750 = vmul.f32 %v353, %v742
      %v751 = vmul.f32 %v354, %v742
      %v752 = vmul.f32 %v355, %v747
      %v753 = vmul.f32 %v356, %v747
      %v754 = vmul.f32 %v357, %v747
      %v755 = vpack.c.bf16 %v752, %v749
      %v756 = vpack.c.bf16 %v753, %v750
      %v757 = vpack.c.bf16 %v754, %v751
      %v761 = vunpack.c.l.b16 %v755
      %v762 = vunpack.c.l.b16 %v756
      %v763 = vunpack.c.l.b16 %v757
      %v764 = vunpack.c.h.b16 %v755
      %v765 = vunpack.c.h.b16 %v756
      %v766 = vunpack.c.h.b16 %v757
      %v767 = vpack.c.b16 %v762, %v761
      %v768 = vpack.c.b16 %v763, %v763
      %v769 = vpack.c.b16 %v765, %v764
      %v770 = vpack.c.b16 %v766, %v766
      %775 = vst [vmem:[%s346] sm:$0xff] %v767
      %776 = vst [vmem:[%s346 + $0x8] sm:$0xf] %v768
      %vm777 = vcmask 1043456
      %vm778 = vsmask.f32 3328
      %vm779 = vmand %vm777, %vm778
      %vm780 = vcmask 1047556
      %vm781 = vsmask.f32 7424
      %vm782 = vmand %vm780, %vm781
      %vm783 = vmor %vm782, %vm779
      %v784 = vld [vmem:[%s346 + $0xc] sm:$0xff]
      %v785 = vsel %vm783, %v769, %v784
      %786 = vst [vmem:[%s346 + $0xc] sm:$0xff] %v785
      %v787 = vld [vmem:[%s346 + $0x14] sm:$0xf]
      %v788 = vsel %vm779, %v770, %v787
      %789 = vst [vmem:[%s346 + $0x14] sm:$0xf] %v788
      %s790 = scalar_lea.vmem %s2, 16
      %v791 = vld [vmem:[%s790] sm:$0xff]
      %v792 = vld [vmem:[%s790 + $0x8] sm:$0x7f]
      %794 = vset.pattern.permute.xlu0 0
      %795 = vperm.xlu0 %794, %v791
      %v796 = vpop.permute.xlu0 %795
      %799 = vset.pattern.permute.xlu0 0
      %800 = vperm.xlu0 %799, %v792
      %v801 = vpop.permute.xlu0 %800
      %v803 = vmul.f32 %v352, %v796
      %v804 = vmul.f32 %v353, %v796
      %v805 = vmul.f32 %v354, %v796
      %v806 = vmul.f32 %v355, %v801
      %v807 = vmul.f32 %v356, %v801
      %v808 = vmul.f32 %v357, %v801
      %v809 = vpack.c.bf16 %v806, %v803
      %v810 = vpack.c.bf16 %v807, %v804
      %v811 = vpack.c.bf16 %v808, %v805
      %v815 = vunpack.c.l.b16 %v809
      %v816 = vunpack.c.l.b16 %v810
      %v817 = vunpack.c.l.b16 %v811
      %v818 = vunpack.c.h.b16 %v809
      %v819 = vunpack.c.h.b16 %v810
      %v820 = vunpack.c.h.b16 %v811
      %v821 = vpack.c.b16 %v816, %v815
      %v822 = vpack.c.b16 %v817, %v817
      %v823 = vpack.c.b16 %v819, %v818
      %v824 = vpack.c.b16 %v820, %v820
      %s829 = scalar_lea.vmem %s346, 24
      %830 = vst [vmem:[%s829] sm:$0xff] %v821
      %831 = vst [vmem:[%s829 + $0x8] sm:$0xf] %v822
      %v832 = vld [vmem:[%s829 + $0xc] sm:$0xff]
      %v833 = vsel %vm783, %v823, %v832
      %834 = vst [vmem:[%s829 + $0xc] sm:$0xff] %v833
      %v835 = vld [vmem:[%s829 + $0x14] sm:$0xf]
      %v836 = vsel %vm779, %v824, %v835
      %837 = vst [vmem:[%s829 + $0x14] sm:$0xf] %v836
      %s838 = scalar_lea.vmem %s317, 48
      %v839 = vld [vmem:[%s838] sm:$0xff]
      %v840 = vld [vmem:[%s838 + $0x8] sm:$0xff]
      %v841 = vld [vmem:[%s838 + $0x10] sm:$0xff]
      %v842 = vld [vmem:[%s838 + $0x18] sm:$0x7f]
      %v843 = vld [vmem:[%s838 + $0x20] sm:$0x7f]
      %v844 = vld [vmem:[%s838 + $0x28] sm:$0x7f]
      %s845 = scalar_lea.vmem %s0, 24
      %v846 = vld [vmem:[%s845] sm:$0xff]
      %v847 = vld [vmem:[%s845 + $0x8] sm:$0xff]
      %v848 = vld [vmem:[%s845 + $0x10] sm:$0xf]
      %v850 = vsel %vm361, %v846, 0
      %v853 = vsel %vm361, %v847, 0
      %v856 = vsel %vm361, %v848, 0
      %v859 = vsel %vm371, %v842, 0
      %v862 = vsel %vm371, %v843, 0
      %v865 = vsel %vm371, %v844, 0
      %867 = vmatprep.subr.mxu0 %v840
      %868 = vmatpush1.msra.mxu0 %v839
      %869 = vmatprep.subr.mxu0 %v862
      %870 = vmatpush1.msra.mxu0 %v859
      %871 = vmatprep.subr.mxu0 0.0
      %872 = vmatpush1.msra.mxu0 0.0
      %873 = vmatprep.subr.mxu0 0.0
      %874 = vmatpush1.msra.mxu0 0.0
      %875 = vmatprep.subr.mxu0 0.0
      %876 = vmatpush1.msra.mxu0 0.0
      %877 = vmatprep.subr.mxu0 0.0
      %878 = vmatpush1.msra.mxu0 0.0
      %879 = vmatprep.subr.mxu0 0.0
      %880 = vmatpush1.msra.mxu0 0.0
      %881 = vmatprep.subr.mxu0 0.0
      %882 = vmatpush1.msra.mxu0 0.0
      %883 = vmatprep.subr.mxu0 0.0
      %884 = vmatpush1.msra.mxu0 0.0
      %885 = vmatprep.subr.mxu0 0.0
      %886 = vmatpush1.msra.mxu0 0.0
      %887 = vmatprep.subr.mxu0 0.0
      %888 = vmatpush1.msra.mxu0 0.0
      %889 = vmatprep.subr.mxu0 0.0
      %890 = vmatpush1.msra.mxu0 0.0
      %891 = vmatprep.subr.mxu0 0.0
      %892 = vmatpush1.msra.mxu0 0.0
      %893 = vmatprep.subr.mxu0 0.0
      %894 = vmatpush1.msra.mxu0 0.0
      %895 = vmatprep.subr.mxu0 0.0
      %896 = vmatpush1.msra.mxu0 0.0
      %897 = vmatprep.subr.mxu0 0.0
      %898 = vmatpush1.msra.mxu0 0.0
      %899 = vmatprep.subr.mxu0 0.0
      %900 = vmatpush1.msra.mxu0 0.0
      %901 = vmatprep.subr.mxu0 0.0
      %902 = vmatpush1.msra.mxu0 0.0
      %903 = vmatprep.subr.mxu0 0.0
      %904 = vmatpush1.msra.mxu0 0.0
      %905 = vmatprep.subr.mxu0 0.0
      %906 = vmatpush1.msra.mxu0 0.0
      %907 = vmatprep.subr.mxu0 0.0
      %908 = vmatpush1.msra.mxu0 0.0
      %909 = vmatprep.subr.mxu0 0.0
      %910 = vmatpush1.msra.mxu0 0.0
      %911 = vmatprep.subr.mxu0 0.0
      %912 = vmatpush1.msra.mxu0 0.0
      %913 = vmatprep.subr.mxu0 0.0
      %914 = vmatpush1.msra.mxu0 0.0
      %915 = vmatprep.subr.mxu0 0.0
      %916 = vmatpush1.msra.mxu0 0.0
      %917 = vmatprep.subr.mxu0 0.0
      %918 = vmatpush1.msra.mxu0 0.0
      %919 = vmatprep.subr.mxu0 0.0
      %920 = vmatpush1.msra.mxu0 0.0
      %921 = vmatprep.subr.mxu0 0.0
      %922 = vmatpush1.msra.mxu0 0.0
      %923 = vmatprep.subr.mxu0 0.0
      %924 = vmatpush1.msra.mxu0 0.0
      %925 = vmatprep.subr.mxu0 0.0
      %926 = vmatpush1.msra.mxu0 0.0
      %927 = vmatprep.subr.mxu0 0.0
      %928 = vmatpush1.msra.mxu0 0.0
      %929 = vmatprep.subr.mxu0 0.0
      %930 = vmatpush1.msra.mxu0 0.0
      %931 = vmatprep.mubr.f32.mxu0 0.0
      %932 = vmatmul.mubr.f32.gmra.mrb[0].mxu0 %v850
      %v933 = vpop.f32.mrb[0].mxu0
      %v934 = vadd.f32 0.0, %v933
      %v935 = vpop.f32.mrb[0].mxu0
      %v936 = vadd.f32 0.0, %v935
      %937 = vmatprep.mubr.f32.mxu0 0.0
      %938 = vmatmul.mubr.f32.gmra.mrb[0].mxu0 %v853
      %v939 = vpop.f32.mrb[0].mxu0
      %v940 = vadd.f32 0.0, %v939
      %v941 = vpop.f32.mrb[0].mxu0
      %v942 = vadd.f32 0.0, %v941
      %943 = vmatprep.mubr.f32.mxu0 0.0
      %944 = vmatmul.mubr.f32.gmra.mrb[0].mxu0 %v856
      %v945 = vpop.f32.mrb[0].mxu0
      %v946 = vadd.f32 0.0, %v945
      %v947 = vpop.f32.mrb[0].mxu0
      %v948 = vadd.f32 0.0, %v947
      %949 = vdwg.mxu0
      %950 = vmatprep.subr.mxu0 0.0
      %951 = vmatpush1.msra.mxu0 %v841
      %952 = vmatprep.subr.mxu0 0.0
      %953 = vmatpush1.msra.mxu0 %v865
      %954 = vmatprep.subr.mxu0 0.0
      %955 = vmatpush1.msra.mxu0 0.0
      %956 = vmatprep.subr.mxu0 0.0
      %957 = vmatpush1.msra.mxu0 0.0
      %958 = vmatprep.subr.mxu0 0.0
      %959 = vmatpush1.msra.mxu0 0.0
      %960 = vmatprep.subr.mxu0 0.0
      %961 = vmatpush1.msra.mxu0 0.0
      %962 = vmatprep.subr.mxu0 0.0
      %963 = vmatpush1.msra.mxu0 0.0
      %964 = vmatprep.subr.mxu0 0.0
      %965 = vmatpush1.msra.mxu0 0.0
      %966 = vmatprep.subr.mxu0 0.0
      %967 = vmatpush1.msra.mxu0 0.0
      %968 = vmatprep.subr.mxu0 0.0
      %969 = vmatpush1.msra.mxu0 0.0
      %970 = vmatprep.subr.mxu0 0.0
      %971 = vmatpush1.msra.mxu0 0.0
      %972 = vmatprep.subr.mxu0 0.0
      %973 = vmatpush1.msra.mxu0 0.0
      %974 = vmatprep.subr.mxu0 0.0
      %975 = vmatpush1.msra.mxu0 0.0
      %976 = vmatprep.subr.mxu0 0.0
      %977 = vmatpush1.msra.mxu0 0.0
      %978 = vmatprep.subr.mxu0 0.0
      %979 = vmatpush1.msra.mxu0 0.0
      %980 = vmatprep.subr.mxu0 0.0
      %981 = vmatpush1.msra.mxu0 0.0
      %982 = vmatprep.subr.mxu0 0.0
      %983 = vmatpush1.msra.mxu0 0.0
      %984 = vmatprep.subr.mxu0 0.0
      %985 = vmatpush1.msra.mxu0 0.0
      %986 = vmatprep.subr.mxu0 0.0
      %987 = vmatpush1.msra.mxu0 0.0
      %988 = vmatprep.subr.mxu0 0.0
      %989 = vmatpush1.msra.mxu0 0.0
      %990 = vmatprep.subr.mxu0 0.0
      %991 = vmatpush1.msra.mxu0 0.0
      %992 = vmatprep.subr.mxu0 0.0
      %993 = vmatpush1.msra.mxu0 0.0
      %994 = vmatprep.subr.mxu0 0.0
      %995 = vmatpush1.msra.mxu0 0.0
      %996 = vmatprep.subr.mxu0 0.0
      %997 = vmatpush1.msra.mxu0 0.0
      %998 = vmatprep.subr.mxu0 0.0
      %999 = vmatpush1.msra.mxu0 0.0
      %1000 = vmatprep.subr.mxu0 0.0
      %1001 = vmatpush1.msra.mxu0 0.0
      %1002 = vmatprep.subr.mxu0 0.0
      %1003 = vmatpush1.msra.mxu0 0.0
      %1004 = vmatprep.subr.mxu0 0.0
      %1005 = vmatpush1.msra.mxu0 0.0
      %1006 = vmatprep.subr.mxu0 0.0
      %1007 = vmatpush1.msra.mxu0 0.0
      %1008 = vmatprep.subr.mxu0 0.0
      %1009 = vmatpush1.msra.mxu0 0.0
      %1010 = vmatprep.subr.mxu0 0.0
      %1011 = vmatpush1.msra.mxu0 0.0
      %1012 = vmatprep.subr.mxu0 0.0
      %1013 = vmatpush1.msra.mxu0 0.0
      %1014 = vmatprep.mubr.f32.mxu0 0.0
      %1015 = vmatmul.mubr.f32.gmra.mrb[0].mxu0 %v850
      %v1016 = vpop.f32.mrb[0].mxu0
      %v1017 = vadd.f32 0.0, %v1016
      %v1018 = vpop.f32.mrb[0].mxu0
      %1019 = vmatprep.mubr.f32.mxu0 0.0
      %1020 = vmatmul.mubr.f32.gmra.mrb[0].mxu0 %v853
      %v1021 = vpop.f32.mrb[0].mxu0
      %v1022 = vadd.f32 0.0, %v1021
      %v1023 = vpop.f32.mrb[0].mxu0
      %1024 = vmatprep.mubr.f32.mxu0 0.0
      %1025 = vmatmul.mubr.f32.gmra.mrb[0].mxu0 %v856
      %v1026 = vpop.f32.mrb[0].mxu0
      %v1027 = vadd.f32 0.0, %v1026
      %v1028 = vpop.f32.mrb[0].mxu0
      %1029 = vdwg.mxu0
      %v1030 = vadd.f32 %v641, %v934
      %v1031 = vadd.f32 %v643, %v936
      %v1032 = vadd.f32 %v724, %v1017
      %v1033 = vadd.f32 %v647, %v940
      %v1034 = vadd.f32 %v649, %v942
      %v1035 = vadd.f32 %v729, %v1022
      %v1036 = vadd.f32 %v653, %v946
      %v1037 = vadd.f32 %v655, %v948
      %v1038 = vadd.f32 %v734, %v1027
      %s1039 = scalar_lea.vmem %s2, 32
      %v1040 = vld [vmem:[%s1039] sm:$0xff]
      %v1041 = vld [vmem:[%s1039 + $0x8] sm:$0x7f]
      %1043 = vset.pattern.permute.xlu0 0
      %1044 = vperm.xlu0 %1043, %v1040
      %v1045 = vpop.permute.xlu0 %1044
      %1048 = vset.pattern.permute.xlu0 0
      %1049 = vperm.xlu0 %1048, %v1041
      %v1050 = vpop.permute.xlu0 %1049
      %v1052 = vmul.f32 %v839, %v1045
      %v1053 = vmul.f32 %v840, %v1045
      %v1054 = vmul.f32 %v841, %v1045
      %v1055 = vmul.f32 %v842, %v1050
      %v1056 = vmul.f32 %v843, %v1050
      %v1057 = vmul.f32 %v844, %v1050
      %v1058 = vpack.c.bf16 %v1055, %v1052
      %v1059 = vpack.c.bf16 %v1056, %v1053
      %v1060 = vpack.c.bf16 %v1057, %v1054
      %v1064 = vunpack.c.l.b16 %v1058
      %v1065 = vunpack.c.l.b16 %v1059
      %v1066 = vunpack.c.l.b16 %v1060
      %v1067 = vunpack.c.h.b16 %v1058
      %v1068 = vunpack.c.h.b16 %v1059
      %v1069 = vunpack.c.h.b16 %v1060
      %v1070 = vpack.c.b16 %v1065, %v1064
      %v1071 = vpack.c.b16 %v1066, %v1066
      %v1072 = vpack.c.b16 %v1068, %v1067
      %v1073 = vpack.c.b16 %v1069, %v1069
      %s1078 = scalar_lea.vmem %s346, 48
      %1079 = vst [vmem:[%s1078] sm:$0xff] %v1070
      %1080 = vst [vmem:[%s1078 + $0x8] sm:$0xf] %v1071
      %v1081 = vld [vmem:[%s1078 + $0xc] sm:$0xff]
      %v1082 = vsel %vm783, %v1072, %v1081
      %1083 = vst [vmem:[%s1078 + $0xc] sm:$0xff] %v1082
      %v1084 = vld [vmem:[%s1078 + $0x14] sm:$0xf]
      %v1085 = vsel %vm779, %v1073, %v1084
      %1086 = vst [vmem:[%s1078 + $0x14] sm:$0xf] %v1085
      %s1087 = scalar_lea.vmem %s2, 48
      %v1088 = vld [vmem:[%s1087] sm:$0xff]
      %v1089 = vld [vmem:[%s1087 + $0x8] sm:$0x7f]
      %1091 = vset.pattern.permute.xlu0 0
      %1092 = vperm.xlu0 %1091, %v1088
      %v1093 = vpop.permute.xlu0 %1092
      %1096 = vset.pattern.permute.xlu0 0
      %1097 = vperm.xlu0 %1096, %v1089
      %v1098 = vpop.permute.xlu0 %1097
      %v1100 = vmul.f32 %v839, %v1093
      %v1101 = vmul.f32 %v840, %v1093
      %v1102 = vmul.f32 %v841, %v1093
      %v1103 = vmul.f32 %v842, %v1098
      %v1104 = vmul.f32 %v843, %v1098
      %v1105 = vmul.f32 %v844, %v1098
      %v1106 = vpack.c.bf16 %v1103, %v1100
      %v1107 = vpack.c.bf16 %v1104, %v1101
      %v1108 = vpack.c.bf16 %v1105, %v1102
      %v1112 = vunpack.c.l.b16 %v1106
      %v1113 = vunpack.c.l.b16 %v1107
      %v1114 = vunpack.c.l.b16 %v1108
      %v1115 = vunpack.c.h.b16 %v1106
      %v1116 = vunpack.c.h.b16 %v1107
      %v1117 = vunpack.c.h.b16 %v1108
      %v1118 = vpack.c.b16 %v1113, %v1112
      %v1119 = vpack.c.b16 %v1114, %v1114
      %v1120 = vpack.c.b16 %v1116, %v1115
      %v1121 = vpack.c.b16 %v1117, %v1117
      %s1126 = scalar_lea.vmem %s346, 72
      %1127 = vst [vmem:[%s1126] sm:$0xff] %v1118
      %1128 = vst [vmem:[%s1126 + $0x8] sm:$0xf] %v1119
      %v1129 = vld [vmem:[%s1126 + $0xc] sm:$0xff]
      %v1130 = vsel %vm783, %v1120, %v1129
      %1131 = vst [vmem:[%s1126 + $0xc] sm:$0xff] %v1130
      %v1132 = vld [vmem:[%s1126 + $0x14] sm:$0xf]
      %v1133 = vsel %vm779, %v1121, %v1132
      %1134 = vst [vmem:[%s1126 + $0x14] sm:$0xf] %v1133
      %v1135 = vpack.c.bf16 %v1033, %v1030
      %v1136 = vpack.c.bf16 %v1034, %v1031
      %v1137 = vpack.c.bf16 %v1035, %v1032
      %v1138 = vpack.c.bf16 %v1036, %v1036
      %v1139 = vpack.c.bf16 %v1037, %v1037
      %v1140 = vpack.c.bf16 %v1038, %v1038
      %v1147 = vunpack.c.l.b16 %v1135
      %v1148 = vunpack.c.l.b16 %v1136
      %v1149 = vunpack.c.l.b16 %v1137
      %v1150 = vunpack.c.h.b16 %v1135
      %v1151 = vunpack.c.h.b16 %v1136
      %v1152 = vunpack.c.h.b16 %v1137
      %v1153 = vunpack.c.l.b16 %v1138
      %v1154 = vunpack.c.l.b16 %v1139
      %v1155 = vunpack.c.l.b16 %v1140
      %v1156 = vpack.c.b16 %v1148, %v1147
      %v1157 = vpack.c.b16 %v1149, %v1149
      %v1158 = vpack.c.b16 %v1151, %v1150
      %v1159 = vpack.c.b16 %v1152, %v1152
      %v1160 = vpack.c.b16 %v1154, %v1153
      %v1161 = vpack.c.b16 %v1155, %v1155
      %1168 = vst [vmem:[%s336] sm:$0xff] %v1156
      %1169 = vst [vmem:[%s336 + $0x8] sm:$0xf] %v1157
      %1170 = vst [vmem:[%s336 + $0xc] sm:$0xff] %v1158
      %1171 = vst [vmem:[%s336 + $0x14] sm:$0xf] %v1159
      %1172 = vst [vmem:[%s336 + $0x18] sm:$0x33] %v1160
      %1173 = vst [vmem:[%s336 + $0x20] sm:$0x3] %v1161
      %s1174 = smul.u32 3, %s22
      %p1175 = scmp.lt.s32.totalorder %s23, 1
      %s1176 = scalar_select %p1175, %s23, 1
      %p1177 = scmp.lt.s32.totalorder %s1174, 2
      %s1178 = scalar_select %p1177, %s1174, 2
      %s1179 = smul.addr %s1176, 9
      %s1180 = sadd.s32 %s1178, %s1179
      %s1181 = smul.addr %s1180, 4
      %s1182 = scalar_lea.vmem %s5, %s1181
      %s1183 = smul.u32 3, %s22
      %p1184 = scmp.lt.s32.totalorder %s23, 1
      %s1185 = scalar_select %p1184, %s23, 1
      %p1186 = scmp.lt.s32.totalorder %s1183, 2
      %s1187 = scalar_select %p1186, %s1183, 2
      %s1188 = smul.addr %s1185, 24
      %s1189 = sadd.s32 %s1187, %s1188
      %s1190 = smul.addr %s1189, 4
      %s1191 = scalar_lea.vmem %s6, %s1190
      // Predicated region
      $region41: #{tpu_custom_call.1} parent=39 // pred_check
        %p1192 = pneg %p169
      $region42: #{tpu_custom_call.1} parent=39 // pred_check_branch
        %1194 = sbr.rel (%p1192) target = $region44
      $region43: #{tpu_custom_call.1} parent=39 // pred_region
        %s1195 = smul.u32 3, %s22
      $region44: #{tpu_custom_call.1} parent=39 // pred_fallthru
        _
      // Predicated region
      $region45: #{tpu_custom_call.1} parent=39 // pred_check
        %p1196 = pneg %p197
      $region46: #{tpu_custom_call.1} parent=39 // pred_check_branch
        %1198 = sbr.rel (%p1196) target = $region48
      $region47: #{tpu_custom_call.1} parent=39 // pred_region
        %s1199 = smul.u32 3, %s22
      $region48: #{tpu_custom_call.1} parent=39 // pred_fallthru
        _
    $region40: #{tpu_custom_call.1} parent=5 // pred_fallthru
      _
    %p1200 = scmp.le.s32.totalorder 2, %s13
    // Predicated region
    $region49: #{tpu_custom_call.1} parent=5 // pred_check
      %p1201 = pneg %p1200
    $region50: #{tpu_custom_call.1} parent=5 // pred_check_branch
      %1203 = sbr.rel (%p1201) target = $region52
    $region51: #{tpu_custom_call.1} parent=5 // pred_region
      %s1204 = ssub.s32 %s13, 2
      // Predicated region
      $region53: #{tpu_custom_call.1} parent=51 // pred_check
        %p1205 = pneg %p175
      $region54: #{tpu_custom_call.1} parent=51 // pred_check_branch
        %1207 = sbr.rel (%p1205) target = $region56
      $region55: #{tpu_custom_call.1} parent=51 // pred_region
        %s1208 = smul.u32 3, %s24
        %p1209 = scmp.lt.s32.totalorder %s25, 1
        %s1210 = scalar_select %p1209, %s25, 1
        %p1211 = scmp.lt.s32.totalorder %s1208, 2
        %s1212 = scalar_select %p1211, %s1208, 2
        %s1213 = smul.addr %s1210, 9
        %s1214 = sadd.s32 %s1212, %s1213
        %s1215 = smul.addr %s1214, 4
        %s1216 = scalar_lea.vmem %s5, %s1215
      $region56: #{tpu_custom_call.1} parent=51 // pred_fallthru
        _
      // Predicated region
      $region57: #{tpu_custom_call.1} parent=51 // pred_check
        %p1217 = pneg %p203
      $region58: #{tpu_custom_call.1} parent=51 // pred_check_branch
        %1219 = sbr.rel (%p1217) target = $region60
      $region59: #{tpu_custom_call.1} parent=51 // pred_region
        %s1220 = smul.u32 3, %s24
        %p1221 = scmp.lt.s32.totalorder %s25, 1
        %s1222 = scalar_select %p1221, %s25, 1
        %p1223 = scmp.lt.s32.totalorder %s1220, 2
        %s1224 = scalar_select %p1223, %s1220, 2
        %s1225 = smul.addr %s1222, 24
        %s1226 = sadd.s32 %s1224, %s1225
        %s1227 = smul.addr %s1226, 4
        %s1228 = scalar_lea.vmem %s6, %s1227
      $region60: #{tpu_custom_call.1} parent=51 // pred_fallthru
        _
    $region52: #{tpu_custom_call.1} parent=5 // pred_fallthru
      _
  $region6: #{tpu_custom_call.1} parent=0 // loop_footer
    %s17 = sadd.s32 1, %s13
  $region7: #{tpu_custom_call.1} parent=0 // loop_footer_branch
    %12 = sbr.rel target = $region3
  $region8: #{tpu_custom_call.1} parent=0 // loop_exit
    _

</llo_original>
